<compile_context>
chip_gen: v7x
topology: tpu7x:2x2x1
jax: 0.10.0
libtpu: 0.0.40
codegen_flags: <defaults>
</compile_context>

<pallas_src>
import functools

import jax
import jax.numpy as jnp
from jax.experimental import pallas as pl
from jax.experimental.pallas import tpu as pltpu


def _label_embedding_kernel(lbl_ref, embt_ref, out_ref, *,
                            px_chunk, class_chunk, vpu_max_classes):
    # lbl_ref : (1, 1, tile_hw) int32 labels (lane-dense pixels)
    # embt_ref: (C, num_classes) f32 embedding table, channels-major
    # out_ref : (1, C, tile_hw) output block (channels x pixels), dtype = table dtype
    C, num_classes = embt_ref.shape
    tile_hw = out_ref.shape[-1]
    n_px = tile_hw // px_chunk

    small_vocab = num_classes <= vpu_max_classes
    if small_vocab:
        # Hoist the tiny per-class columns once (<= 8 * C floats; stays in vregs).
        cols = [embt_ref[:, c:c + 1] for c in range(num_classes)]   # each (C, 1)

    def do_chunk(start):
        lbl = lbl_ref[0, :, pl.ds(start, px_chunk)]                 # (1, px_chunk) int32
        acc = jnp.zeros((C, px_chunk), jnp.float32)
        if small_vocab:
            # Tiny vocabulary: pure-VPU compare/select accumulation, no MXU.
            for c in range(num_classes):                            # static, <= 8 iters
                acc = acc + jnp.where(lbl == c, cols[c], 0.0)
        else:
            # Larger vocabulary: class-chunked one-hot matmul on the MXU.
            n_cls_chunks = (num_classes + class_chunk - 1) // class_chunk
            for kc in range(n_cls_chunks):                          # static
                k0 = kc * class_chunk
                kn = min(class_chunk, num_classes - k0)
                cls_ids = k0 + jax.lax.broadcasted_iota(
                    jnp.int32, (kn, px_chunk), 0)
                one_hot = (cls_ids == lbl).astype(jnp.float32)      # (kn, px_chunk)
                acc = acc + jnp.dot(embt_ref[:, k0:k0 + kn], one_hot,
                                    preferred_element_type=jnp.float32)
        out_ref[0, :, pl.ds(start, px_chunk)] = acc.astype(out_ref.dtype)

    if n_px == 1:
        do_chunk(0)
    else:
        @pl.loop(0, n_px)
        def _(p):
            do_chunk(pl.multiple_of(p * px_chunk, px_chunk))


def label_embedding_pallas(x, emb_table):
    """x: (B, 1, H, W) integer labels. emb_table: (num_classes, C).

    Returns (B, C, H, W) in emb_table.dtype, matching PyTorch LabelEmbedding.forward
    (emb_layer(x.long().squeeze(1)).permute(0, 3, 1, 2)).
    """
    assert x.ndim == 4, f"x.shape should be (B, 1, H, W) but {x.shape}"
    assert x.shape[1] == 1, f"x.shape should be (B, 1, H, W) but {x.shape}"
    B, _, H, W = x.shape
    num_classes, C = emb_table.shape
    HW = H * W
    out_dtype = emb_table.dtype
    out_isz = jnp.dtype(out_dtype).itemsize

    VPU_MAX_CLASSES = 8      # compare-select threshold (safe on v5e/v6e/v7x)
    CLASS_CHUNK = 256        # class-chunk size for the one-hot MXU path

    # --- pixel sub-chunk: keep the live (C, px) accumulator <= ~128 KiB (~32 vregs) ---
    px = 512
    while C * px * 4 > (128 << 10) and px > 128:
        px //= 2

    if HW <= px:
        # One tile covering the whole row; block dims equal the array dims (always legal).
        tile_hw = HW
        px = HW
    else:
        # Target ~4 MiB of output per grid step (amortize per-step overhead).
        tile_hw = max(px, ((4 << 20) // (out_isz * C)) // px * px)
        tile_hw = min(tile_hw, (HW // px) * px)

        def est_vmem(t):
            out_blk = out_isz * C * t
            lbl_blk = 4 * t
            tbl = 4 * num_classes * C
            temps = 4 * C * px + 2 * 4 * min(num_classes, CLASS_CHUNK) * px
            return 2 * (out_blk + lbl_blk + tbl) + temps

        # v7x-safe VMEM budget: keep double-buffered blocks + temporaries under ~16 MiB.
        while tile_hw > px and est_vmem(tile_hw) > (16 << 20):
            tile_hw = max(px, (tile_hw // 2 // px) * px)

        # Keep >= 2 grid steps so both v7x TensorCores get balanced work.
        while B * pl.cdiv(HW, tile_hw) < 2 and tile_hw > px:
            tile_hw = max(px, (tile_hw // 2 // px) * px)

    n_tiles = pl.cdiv(HW, tile_hw)
    HW_pad = n_tiles * tile_hw

    # Labels: lane-dense (B, 1, HW_pad); only the (cheap) input side is padded — the
    # output is emitted at true HW and the tail tile's stores are masked by Pallas.
    labels = x.astype(jnp.int32).reshape(B, HW)
    if HW_pad != HW:
        labels = jnp.pad(labels, ((0, 0), (0, HW_pad - HW)))
    labels = labels.reshape(B, 1, HW_pad)

    # Channels-major table so the kernel writes (C, tile_hw) blocks with no transpose.
    embt = emb_table.astype(jnp.float32).T                    # (C, num_classes)

    kernel = functools.partial(_label_embedding_kernel,
                               px_chunk=px,
                               class_chunk=CLASS_CHUNK,
                               vpu_max_classes=VPU_MAX_CLASSES)

    cost = pl.CostEstimate(
        flops=2 * B * HW_pad * C * num_classes,               # advisory only
        transcendentals=0,
        bytes_accessed=B * HW * C * out_isz + 4 * B * HW_pad + 4 * num_classes * C,
    )

    out = pl.pallas_call(
        kernel,
        out_shape=jax.ShapeDtypeStruct((B, C, HW), out_dtype),
        grid_spec=pltpu.PrefetchScalarGridSpec(
            num_scalar_prefetch=0,
            grid=(B, n_tiles),
            in_specs=[
                # lane-dense label row for this (batch, pixel-tile)
                pl.BlockSpec((1, 1, tile_hw), lambda b, i: (b, 0, i)),
                # whole transposed table, resident every step
                pl.BlockSpec((C, num_classes), lambda b, i: (0, 0)),
            ],
            # fused NCHW output: channels-major, lane-dense pixel axis, true HW extent
            out_specs=pl.BlockSpec((1, C, tile_hw), lambda b, i: (b, 0, i)),
        ),
        compiler_params=pltpu.CompilerParams(
            dimension_semantics=("parallel", "parallel"),
            vmem_limit_bytes=32 * 1024 * 1024,
        ),
        cost_estimate=cost,
    )(labels, embt)

    return out.reshape(B, C, H, W)


if __name__ == "__main__":
    key = jax.random.PRNGKey(0)
    k1, k2, k3, k4 = jax.random.split(key, 4)

    B, H, W = 2, 16, 16

    # --- Config 1: small vocabulary (exercises the VPU compare-select path) ---
    num_classes, channels = 8, 32
    emb_table = jax.random.normal(k1, (num_classes, channels), dtype=jnp.float32)
    x = jax.random.randint(k2, (B, 1, H, W), 0, num_classes, dtype=jnp.int32)

    out = jax.block_until_ready(label_embedding_pallas(x, emb_table))
    ref = jnp.take(emb_table, x[:, 0], axis=0).transpose(0, 3, 1, 2)   # (B, C, H, W)
    assert out.shape == (B, channels, H, W)
    assert out.dtype == emb_table.dtype
    assert jnp.allclose(out, ref, atol=1e-5, rtol=1e-5)

    # --- Config 2: larger vocabulary (exercises the class-chunked one-hot MXU path) ---
    num_classes2, channels2 = 300, 32
    emb_table2 = jax.random.normal(k3, (num_classes2, channels2), dtype=jnp.float32)
    x2 = jax.random.randint(k4, (B, 1, H, W), 0, num_classes2, dtype=jnp.int32)

    out2 = jax.block_until_ready(label_embedding_pallas(x2, emb_table2))
    ref2 = jnp.take(emb_table2, x2[:, 0], axis=0).transpose(0, 3, 1, 2)
    assert out2.shape == (B, channels2, H, W)
    assert jnp.allclose(out2, ref2, atol=1e-5, rtol=1e-5)

    print("KERNEL_OK")
</pallas_src>

<mosaic_0001>
module attributes {stable_mosaic.version = 11 : i64} {
  func.func @_label_embedding_kernel(%arg0: i32, %arg1: i32, %arg2: memref<1x1x256xi32, #tpu.memory_space<vmem>>, %arg3: memref<32x8xf32, #tpu.memory_space<vmem>>, %arg4: memref<1x32x256xf32, #tpu.memory_space<vmem>>) attributes {dimension_semantics = [#tpu.dimension_semantics<parallel>, #tpu.dimension_semantics<parallel>], iteration_bounds = array<i64: 2, 1>, scalar_prefetch = 0 : i64, scratch_operands = 0 : i64, tpu.core_type = #tpu.core_type<tc>, window_params = [{transform_indices = @transform_0, window_bounds = array<i64: 1, 1, 256>}, {pipeline_mode = #tpu.pipeline_mode<synchronous>, transform_indices = @transform_1, window_bounds = array<i64: 32, 8>}, {transform_indices = @transform_2, window_bounds = array<i64: 1, 32, 256>}]} {
    %c0 = arith.constant 0 : index
    %c0_0 = arith.constant 0 : index
    %0 = vector.load %arg3[%c0, %c0_0] : memref<32x8xf32, #tpu.memory_space<vmem>>, vector<32x1xf32>
    %c0_1 = arith.constant 0 : index
    %c1 = arith.constant 1 : index
    %1 = vector.load %arg3[%c0_1, %c1] : memref<32x8xf32, #tpu.memory_space<vmem>>, vector<32x1xf32>
    %c0_2 = arith.constant 0 : index
    %c2 = arith.constant 2 : index
    %2 = vector.load %arg3[%c0_2, %c2] : memref<32x8xf32, #tpu.memory_space<vmem>>, vector<32x1xf32>
    %c0_3 = arith.constant 0 : index
    %c3 = arith.constant 3 : index
    %3 = vector.load %arg3[%c0_3, %c3] : memref<32x8xf32, #tpu.memory_space<vmem>>, vector<32x1xf32>
    %c0_4 = arith.constant 0 : index
    %c4 = arith.constant 4 : index
    %4 = vector.load %arg3[%c0_4, %c4] : memref<32x8xf32, #tpu.memory_space<vmem>>, vector<32x1xf32>
    %c0_5 = arith.constant 0 : index
    %c5 = arith.constant 5 : index
    %5 = vector.load %arg3[%c0_5, %c5] : memref<32x8xf32, #tpu.memory_space<vmem>>, vector<32x1xf32>
    %c0_6 = arith.constant 0 : index
    %c6 = arith.constant 6 : index
    %6 = vector.load %arg3[%c0_6, %c6] : memref<32x8xf32, #tpu.memory_space<vmem>>, vector<32x1xf32>
    %c0_7 = arith.constant 0 : index
    %c7 = arith.constant 7 : index
    %7 = vector.load %arg3[%c0_7, %c7] : memref<32x8xf32, #tpu.memory_space<vmem>>, vector<32x1xf32>
    %c0_8 = arith.constant 0 : index
    %c0_9 = arith.constant 0 : index
    %c0_10 = arith.constant 0 : index
    %8 = vector.load %arg2[%c0_8, %c0_9, %c0_10] : memref<1x1x256xi32, #tpu.memory_space<vmem>>, vector<1x1x256xi32>
    %9 = vector.shape_cast %8 : vector<1x1x256xi32> to vector<1x256xi32>
    %cst = arith.constant 0.000000e+00 : f32
    %10 = vector.broadcast %cst : f32 to vector<32x256xf32>
    %c0_i32 = arith.constant 0 : i32
    %11 = vector.broadcast %c0_i32 : i32 to vector<1x256xi32>
    %12 = arith.cmpi eq, %9, %11 : vector<1x256xi32>
    %cst_11 = arith.constant 0.000000e+00 : f32
    %13 = vector.shape_cast %12 : vector<1x256xi1> to vector<1x256xi1>
    %14 = vector.broadcast %13 : vector<1x256xi1> to vector<32x256xi1>
    %15 = vector.shape_cast %0 : vector<32x1xf32> to vector<32x1xf32>
    %16 = vector.broadcast %15 : vector<32x1xf32> to vector<32x256xf32>
    %17 = vector.broadcast %cst_11 : f32 to vector<32x256xf32>
    %18 = arith.select %14, %16, %17 : vector<32x256xi1>, vector<32x256xf32>
    %19 = arith.addf %10, %18 : vector<32x256xf32>
    %c1_i32 = arith.constant 1 : i32
    %20 = vector.broadcast %c1_i32 : i32 to vector<1x256xi32>
    %21 = arith.cmpi eq, %9, %20 : vector<1x256xi32>
    %cst_12 = arith.constant 0.000000e+00 : f32
    %22 = vector.shape_cast %21 : vector<1x256xi1> to vector<1x256xi1>
    %23 = vector.broadcast %22 : vector<1x256xi1> to vector<32x256xi1>
    %24 = vector.shape_cast %1 : vector<32x1xf32> to vector<32x1xf32>
    %25 = vector.broadcast %24 : vector<32x1xf32> to vector<32x256xf32>
    %26 = vector.broadcast %cst_12 : f32 to vector<32x256xf32>
    %27 = arith.select %23, %25, %26 : vector<32x256xi1>, vector<32x256xf32>
    %28 = arith.addf %19, %27 : vector<32x256xf32>
    %c2_i32 = arith.constant 2 : i32
    %29 = vector.broadcast %c2_i32 : i32 to vector<1x256xi32>
    %30 = arith.cmpi eq, %9, %29 : vector<1x256xi32>
    %cst_13 = arith.constant 0.000000e+00 : f32
    %31 = vector.shape_cast %30 : vector<1x256xi1> to vector<1x256xi1>
    %32 = vector.broadcast %31 : vector<1x256xi1> to vector<32x256xi1>
    %33 = vector.shape_cast %2 : vector<32x1xf32> to vector<32x1xf32>
    %34 = vector.broadcast %33 : vector<32x1xf32> to vector<32x256xf32>
    %35 = vector.broadcast %cst_13 : f32 to vector<32x256xf32>
    %36 = arith.select %32, %34, %35 : vector<32x256xi1>, vector<32x256xf32>
    %37 = arith.addf %28, %36 : vector<32x256xf32>
    %c3_i32 = arith.constant 3 : i32
    %38 = vector.broadcast %c3_i32 : i32 to vector<1x256xi32>
    %39 = arith.cmpi eq, %9, %38 : vector<1x256xi32>
    %cst_14 = arith.constant 0.000000e+00 : f32
    %40 = vector.shape_cast %39 : vector<1x256xi1> to vector<1x256xi1>
    %41 = vector.broadcast %40 : vector<1x256xi1> to vector<32x256xi1>
    %42 = vector.shape_cast %3 : vector<32x1xf32> to vector<32x1xf32>
    %43 = vector.broadcast %42 : vector<32x1xf32> to vector<32x256xf32>
    %44 = vector.broadcast %cst_14 : f32 to vector<32x256xf32>
    %45 = arith.select %41, %43, %44 : vector<32x256xi1>, vector<32x256xf32>
    %46 = arith.addf %37, %45 : vector<32x256xf32>
    %c4_i32 = arith.constant 4 : i32
    %47 = vector.broadcast %c4_i32 : i32 to vector<1x256xi32>
    %48 = arith.cmpi eq, %9, %47 : vector<1x256xi32>
    %cst_15 = arith.constant 0.000000e+00 : f32
    %49 = vector.shape_cast %48 : vector<1x256xi1> to vector<1x256xi1>
    %50 = vector.broadcast %49 : vector<1x256xi1> to vector<32x256xi1>
    %51 = vector.shape_cast %4 : vector<32x1xf32> to vector<32x1xf32>
    %52 = vector.broadcast %51 : vector<32x1xf32> to vector<32x256xf32>
    %53 = vector.broadcast %cst_15 : f32 to vector<32x256xf32>
    %54 = arith.select %50, %52, %53 : vector<32x256xi1>, vector<32x256xf32>
    %55 = arith.addf %46, %54 : vector<32x256xf32>
    %c5_i32 = arith.constant 5 : i32
    %56 = vector.broadcast %c5_i32 : i32 to vector<1x256xi32>
    %57 = arith.cmpi eq, %9, %56 : vector<1x256xi32>
    %cst_16 = arith.constant 0.000000e+00 : f32
    %58 = vector.shape_cast %57 : vector<1x256xi1> to vector<1x256xi1>
    %59 = vector.broadcast %58 : vector<1x256xi1> to vector<32x256xi1>
    %60 = vector.shape_cast %5 : vector<32x1xf32> to vector<32x1xf32>
    %61 = vector.broadcast %60 : vector<32x1xf32> to vector<32x256xf32>
    %62 = vector.broadcast %cst_16 : f32 to vector<32x256xf32>
    %63 = arith.select %59, %61, %62 : vector<32x256xi1>, vector<32x256xf32>
    %64 = arith.addf %55, %63 : vector<32x256xf32>
    %c6_i32 = arith.constant 6 : i32
    %65 = vector.broadcast %c6_i32 : i32 to vector<1x256xi32>
    %66 = arith.cmpi eq, %9, %65 : vector<1x256xi32>
    %cst_17 = arith.constant 0.000000e+00 : f32
    %67 = vector.shape_cast %66 : vector<1x256xi1> to vector<1x256xi1>
    %68 = vector.broadcast %67 : vector<1x256xi1> to vector<32x256xi1>
    %69 = vector.shape_cast %6 : vector<32x1xf32> to vector<32x1xf32>
    %70 = vector.broadcast %69 : vector<32x1xf32> to vector<32x256xf32>
    %71 = vector.broadcast %cst_17 : f32 to vector<32x256xf32>
    %72 = arith.select %68, %70, %71 : vector<32x256xi1>, vector<32x256xf32>
    %73 = arith.addf %64, %72 : vector<32x256xf32>
    %c7_i32 = arith.constant 7 : i32
    %74 = vector.broadcast %c7_i32 : i32 to vector<1x256xi32>
    %75 = arith.cmpi eq, %9, %74 : vector<1x256xi32>
    %cst_18 = arith.constant 0.000000e+00 : f32
    %76 = vector.shape_cast %75 : vector<1x256xi1> to vector<1x256xi1>
    %77 = vector.broadcast %76 : vector<1x256xi1> to vector<32x256xi1>
    %78 = vector.shape_cast %7 : vector<32x1xf32> to vector<32x1xf32>
    %79 = vector.broadcast %78 : vector<32x1xf32> to vector<32x256xf32>
    %80 = vector.broadcast %cst_18 : f32 to vector<32x256xf32>
    %81 = arith.select %77, %79, %80 : vector<32x256xi1>, vector<32x256xf32>
    %82 = arith.addf %73, %81 : vector<32x256xf32>
    %c0_19 = arith.constant 0 : index
    %c0_20 = arith.constant 0 : index
    %c0_21 = arith.constant 0 : index
    %83 = vector.load %arg4[%c0_19, %c0_20, %c0_21] : memref<1x32x256xf32, #tpu.memory_space<vmem>>, vector<1x32x256xf32>
    %84 = vector.shape_cast %83 : vector<1x32x256xf32> to vector<32x256xf32>
    %85 = vector.shape_cast %82 : vector<32x256xf32> to vector<1x32x256xf32>
    tpu.vector_store %arg4[%c0_19, %c0_20, %c0_21], %85 {strides = array<i32>} : memref<1x32x256xf32, #tpu.memory_space<vmem>>, vector<1x32x256xf32>,
    return
  }
  func.func @transform_0(%arg0: i32, %arg1: i32) -> (i32, i32, i32) {
    %c0_i32 = arith.constant 0 : i32
    %c0_i32_0 = arith.constant 0 : i32
    return %arg0, %c0_i32, %arg1 : i32, i32, i32
  }
  func.func @transform_1(%arg0: i32, %arg1: i32) -> (i32, i32) {
    %c0_i32 = arith.constant 0 : i32
    %c0_i32_0 = arith.constant 0 : i32
    %c0_i32_1 = arith.constant 0 : i32
    return %c0_i32, %c0_i32_0 : i32, i32
  }
  func.func @transform_2(%arg0: i32, %arg1: i32) -> (i32, i32, i32) {
    %c0_i32 = arith.constant 0 : i32
    %c0_i32_0 = arith.constant 0 : i32
    return %arg0, %c0_i32, %arg1 : i32, i32, i32
  }
}

</mosaic_0001>

<llo_original>
// kernel: tpu_custom_call.1
$region0: #{tpu_custom_call.1}
  #allocation0 [shape = 'u32[]', space=smem, size = 0x4, offset = 0x4, fixed_abs, tag = 'smem constant byte address 0x4 - core index']
  #allocation1 [shape = 'u32[144,128]{1,0:T(1,128)}', space=vmem, size = 0x12000, scoped, tag = 'internal scratch']
  %s0 = inlined_call_operand.vmem [shape: s32[2,1,256], index: 0, kind: input, shape index: {}]
  %s1 = inlined_call_operand.vmem [shape: f32[32,8], index: 1, kind: input, shape index: {}]
  %s2 = inlined_call_operand.hbm [shape: f32[2,32,256], index: 2, kind: output, shape index: {}]
  %s3 = sld [smem:[#allocation0]]
  $region41: #{tpu_custom_call.1} parent=0
    _
  %s5 = ssub.s32 1, %s3
  %s6 = scalar_select 0, %s5, %s3
  $region1: #{tpu_custom_call.1} parent=0
    #allocation2 [shape = 'u8[65536]{0}', space=vmem, size = 0x10000, scoped, tag = 'output window, operand 0']
    #allocation3 [shape = 's32[2]{0}', space=sflag, size = 0x8, scoped, tag = 'scoped memory for tpu_custom_call.1']
    %7 = vsyncpa [#allocation3], 0
    %s8 = scalar_lea.sflag [#allocation3], 1
    %9 = vsyncpa %s8, 0
    loop: start=0, step=1, limit=4
    $region2: #{tpu_custom_call.1} parent=1 // loop_pre_header
      _
    $region3: #{tpu_custom_call.1} parent=1 // loop_header
      %s11 = sphi 0, %s15
      %p12 = scmp.ge.s32.totalorder %s11, 4
      %s18 = sphi 0, %s30
      %s19 = sphi 0, %s26
      %s20 = sphi 0, %s18
      %s21 = sphi 0, %s19
      %s22 = sphi 0, %s20
      %s23 = sphi 0, %s21
      %s35 = sphi 0, %s37
      %s38 = sphi 0, %s35
      %s39 = sphi 0, %s38
      %s55 = sphi 0, %s39
      %s59 = sphi 0, %s59
      %s61 = sphi 0, %s59
      %s62 = sphi 0, %s61
      %s76 = sphi 0, %s62
      %s84 = sphi 0, %s86
      %s87 = sphi 0, %s84
      %s88 = sphi 0, %s87
      %s104 = sphi 0, %s88
    $region4: #{tpu_custom_call.1} parent=1 // loop_header_branch
      %14 = sbr.rel (%p12) target = $region8
    $region5: #{tpu_custom_call.1} parent=1 // loop_body
      %s16 = ssub.s32 %s11, 1
      %s17 = ssub.s32 %s11, 2
      %s24 = sadd.s32 1, %s19
      %p25 = scmp.ge.s32.totalorder %s24, 1
      %s26 = scalar_select %p25, 0, %s24
      %s27 = sadd.s32 1, %s18
      %s28 = scalar_select %p25, %s27, %s18
      %p29 = scmp.ge.s32.totalorder %s28, 2
      %s30 = scalar_select %p29, 0, %s28
      %s31 = ssub.s32 %s18, %s30
      %s32 = ssub.s32 %s19, %s26
      %s33 = sor.u32 %s31, %s32
      %p34 = scmp.eq.s32.totalorder %s33, 0
      %s36 = sadd.s32 %s35, 1
      %s37 = scalar_select %p34, %s35, %s36
      %p40 = pneg %p34
      %p41 = scmp.eq.s32.totalorder %s11, 1
      %p42 = por %p40, %p41
      %p43 = scmp.ne.s32.totalorder %s35, %s38
      %p44 = scmp.eq.s32.totalorder %s11, 0
      %p45 = por %p43, %p44
      %p46 = scmp.ne.s32.totalorder %s35, %s38
      %p47 = scmp.eq.s32.totalorder %s16, 1
      %p48 = por %p46, %p47
      %p49 = scmp.ne.s32.totalorder %s38, %s39
      %p50 = scmp.eq.s32.totalorder %s16, 0
      %p51 = por %p49, %p50
      %p52 = scmp.ne.s32.totalorder %s38, %s39
      %p53 = scmp.eq.s32.totalorder %s17, 1
      %p54 = por %p52, %p53
      %p56 = scmp.ne.s32.totalorder %s39, %s55
      %p57 = scmp.eq.s32.totalorder %s17, 0
      %p58 = por %p56, %p57
      %s60 = sadd.s32 %s59, 1
      %p63 = scmp.eq.s32.totalorder %s11, 1
      %p64 = scmp.ne.s32.totalorder %s59, %s61
      %p65 = scmp.eq.s32.totalorder %s11, 0
      %p66 = por %p64, %p65
      %p67 = scmp.ne.s32.totalorder %s59, %s61
      %p68 = scmp.eq.s32.totalorder %s16, 1
      %p69 = por %p67, %p68
      %p70 = scmp.ne.s32.totalorder %s61, %s62
      %p71 = scmp.eq.s32.totalorder %s16, 0
      %p72 = por %p70, %p71
      %p73 = scmp.ne.s32.totalorder %s61, %s62
      %p74 = scmp.eq.s32.totalorder %s17, 1
      %p75 = por %p73, %p74
      %p77 = scmp.ne.s32.totalorder %s62, %s76
      %p78 = scmp.eq.s32.totalorder %s17, 0
      %p79 = por %p77, %p78
      %s80 = ssub.s32 %s18, %s30
      %s81 = ssub.s32 %s19, %s26
      %s82 = sor.u32 %s80, %s81
      %p83 = scmp.eq.s32.totalorder %s82, 0
      %s85 = sadd.s32 %s84, 1
      %s86 = scalar_select %p83, %s84, %s85
      %p89 = pneg %p83
      %p90 = scmp.eq.s32.totalorder %s11, 1
      %p91 = por %p89, %p90
      %p92 = scmp.ne.s32.totalorder %s84, %s87
      %p93 = scmp.eq.s32.totalorder %s11, 0
      %p94 = por %p92, %p93
      %p95 = scmp.ne.s32.totalorder %s84, %s87
      %p96 = scmp.eq.s32.totalorder %s16, 1
      %p97 = por %p95, %p96
      %p98 = scmp.ne.s32.totalorder %s87, %s88
      %p99 = scmp.eq.s32.totalorder %s16, 0
      %p100 = por %p98, %p99
      %p101 = scmp.ne.s32.totalorder %s87, %s88
      %p102 = scmp.eq.s32.totalorder %s17, 1
      %p103 = por %p101, %p102
      %p105 = scmp.ne.s32.totalorder %s88, %s104
      %p106 = scmp.eq.s32.totalorder %s17, 0
      %p107 = por %p105, %p106
      %p108 = scmp.le.s32.totalorder 1, %s11
      %p109 = scmp.lt.s32.totalorder %s11, 3
      %p110 = pnand %p108, %p109
      %p111 = pneg %p110
      // Predicated region
      $region9: #{tpu_custom_call.1} parent=5 // pred_check
        _
      $region10: #{tpu_custom_call.1} parent=5 // pred_check_branch
        %113 = sbr.rel (%p110) target = $region12
      $region11: #{tpu_custom_call.1} parent=5 // pred_region
        %s114 = ssub.s32 %s11, 1
        // Predicated region
        $region13: #{tpu_custom_call.1} parent=11 // pred_check
          %p115 = pneg %p72
        $region14: #{tpu_custom_call.1} parent=11 // pred_check_branch
          %117 = sbr.rel (%p115) target = $region16
        $region15: #{tpu_custom_call.1} parent=11 // pred_region
          _
        $region16: #{tpu_custom_call.1} parent=11 // pred_fallthru
          _
      $region12: #{tpu_custom_call.1} parent=5 // pred_fallthru
        _
      %p118 = scmp.lt.s32.totalorder %s11, 2
      // Predicated region
      $region17: #{tpu_custom_call.1} parent=5 // pred_check
        %p119 = pneg %p118
      $region18: #{tpu_custom_call.1} parent=5 // pred_check_branch
        %121 = sbr.rel (%p119) target = $region20
      $region19: #{tpu_custom_call.1} parent=5 // pred_region
        // Predicated region
        $region21: #{tpu_custom_call.1} parent=19 // pred_check
          %p122 = pneg %p45
        $region22: #{tpu_custom_call.1} parent=19 // pred_check_branch
          %124 = sbr.rel (%p122) target = $region24
        $region23: #{tpu_custom_call.1} parent=19 // pred_region
          %s125 = smul.u32 2, %s19
          %p126 = scmp.lt.s32.totalorder %s18, 1
          %s127 = scalar_select %p126, %s18, 1
          %p128 = scmp.lt.s32.totalorder %s125, 1
          %s129 = scalar_select %p128, %s125, 1
          %s130 = smul.addr %s127, 2
          %s131 = sadd.s32 %s129, %s130
          %s132 = scalar_lea.vmem %s0, %s131
          %s133 = smul.u32 2, %s19
        $region24: #{tpu_custom_call.1} parent=19 // pred_fallthru
          _
      $region20: #{tpu_custom_call.1} parent=5 // pred_fallthru
        _
      %p134 = scmp.le.s32.totalorder 1, %s11
      %p135 = scmp.lt.s32.totalorder %s11, 3
      %p136 = pnand %p134, %p135
      %p137 = pneg %p136
      // Predicated region
      $region25: #{tpu_custom_call.1} parent=5 // pred_check
        _
      $region26: #{tpu_custom_call.1} parent=5 // pred_check_branch
        %139 = sbr.rel (%p136) target = $region28
      $region27: #{tpu_custom_call.1} parent=5 // pred_region
        %s140 = ssub.s32 %s11, 1
        %s141 = smul.u32 2, %s21
        %p142 = scmp.lt.s32.totalorder %s20, 1
        %s143 = scalar_select %p142, %s20, 1
        %p144 = scmp.lt.s32.totalorder %s141, 1
        %s145 = scalar_select %p144, %s141, 1
        %s146 = smul.addr %s143, 2
        %s147 = sadd.s32 %s145, %s146
        %s148 = scalar_lea.vmem %s0, %s147
        %p149 = pneg %p51
        %p150 = pneg %p48
        %p151 = pneg %p72
        %p152 = pneg %p69
        %p153 = pneg %p100
        %p154 = pneg %p97
        %s155 = sand.u32 %s87, 1
        %s156 = scalar_lea.sflag [#allocation3], %s155
        %s157 = sand.u32 %s87, 1
        %s158 = smul.addr %s157, 64
        %s159 = scalar_lea.vmem [#allocation2], %s158
        %s160 = smul.u32 2, %s21
        %p161 = scmp.lt.s32.totalorder %s20, 1
        %s162 = scalar_select %p161, %s20, 1
        %p163 = scmp.lt.s32.totalorder %s160, 1
        %s164 = scalar_select %p163, %s160, 1
        %s165 = smul.addr %s162, 2
        %s166 = sadd.s32 %s164, %s165
        %s167 = scalar_lea.vmem %s0, %s166
        %s168 = smul.u32 2, %s21
        %s169 = smul.u32 2, %s21
        %v170 = vld [vmem:[%s1] sm:$0xff]
        %v171 = vld [vmem:[%s1 + $0x8] sm:$0xff]
        %v172 = vld [vmem:[%s1 + $0x10] sm:$0xff]
        %v173 = vld [vmem:[%s1 + $0x18] sm:$0xff]
        %v174 = vld [vmem:[%s167] sm:$0x3]
        %vm175 = vcmp.eq.s32.totalorder %v174, 0
        %v176 = vsel %vm175, 1, 0
        %v177 = vlaneseq
        %v178 = vshrl.u32 %v177, 7
        %v179 = vsub.s32 0, %v178
        %v180 = vrot.slane %v176, %v179
        %v181 = vlaneseq
        %v182 = vshrl.u32 %v181, 7
        %v183 = vsub.s32 1, %v182
        %v184 = vrot.slane %v176, %v183
        %vm185 = vcmp.eq.s32.totalorder %v180, 1
        %vm186 = vcmp.eq.s32.totalorder %v184, 1
        %188 = vset.pattern.permute.xlu0 0
        %189 = vperm.xlu0 %188, %v170
        %v190 = vpop.permute.xlu0 %189
        %193 = vset.pattern.permute.xlu0 0
        %194 = vperm.xlu0 %193, %v171
        %v195 = vpop.permute.xlu0 %194
        %198 = vset.pattern.permute.xlu0 0
        %199 = vperm.xlu0 %198, %v172
        %v200 = vpop.permute.xlu0 %199
        %203 = vset.pattern.permute.xlu0 0
        %204 = vperm.xlu0 %203, %v173
        %v205 = vpop.permute.xlu0 %204
        %v207 = vsel %vm185, %v190, 0.0
        %v208 = vsel %vm186, %v190, 0.0
        %v209 = vsel %vm185, %v195, 0.0
        %v210 = vsel %vm186, %v195, 0.0
        %v211 = vsel %vm185, %v200, 0.0
        %v212 = vsel %vm186, %v200, 0.0
        %v213 = vsel %vm185, %v205, 0.0
        %v214 = vsel %vm186, %v205, 0.0
        %v215 = vadd.f32 %v207, 0.0
        %v216 = vadd.f32 %v208, 0.0
        %v217 = vadd.f32 %v209, 0.0
        %v218 = vadd.f32 %v210, 0.0
        %v219 = vadd.f32 %v211, 0.0
        %v220 = vadd.f32 %v212, 0.0
        %v221 = vadd.f32 %v213, 0.0
        %v222 = vadd.f32 %v214, 0.0
        %vm223 = vcmp.eq.s32.totalorder %v174, 1
        %v224 = vsel %vm223, 1, 0
        %v225 = vlaneseq
        %v226 = vshrl.u32 %v225, 7
        %v227 = vsub.s32 0, %v226
        %v228 = vrot.slane %v224, %v227
        %v229 = vlaneseq
        %v230 = vshrl.u32 %v229, 7
        %v231 = vsub.s32 1, %v230
        %v232 = vrot.slane %v224, %v231
        %vm233 = vcmp.eq.s32.totalorder %v228, 1
        %vm234 = vcmp.eq.s32.totalorder %v232, 1
        %235 = vset.pattern.permute.xlu0 1
        %236 = vperm.xlu0 %235, %v170
        %v237 = vpop.permute.xlu0 %236
        %239 = vset.pattern.permute.xlu0 1
        %240 = vperm.xlu0 %239, %v171
        %v241 = vpop.permute.xlu0 %240
        %243 = vset.pattern.permute.xlu0 1
        %244 = vperm.xlu0 %243, %v172
        %v245 = vpop.permute.xlu0 %244
        %247 = vset.pattern.permute.xlu0 1
        %248 = vperm.xlu0 %247, %v173
        %v249 = vpop.permute.xlu0 %248
        %v251 = vsel %vm233, %v237, 0.0
        %v252 = vsel %vm234, %v237, 0.0
        %v253 = vsel %vm233, %v241, 0.0
        %v254 = vsel %vm234, %v241, 0.0
        %v255 = vsel %vm233, %v245, 0.0
        %v256 = vsel %vm234, %v245, 0.0
        %v257 = vsel %vm233, %v249, 0.0
        %v258 = vsel %vm234, %v249, 0.0
        %v259 = vadd.f32 %v215, %v251
        %v260 = vadd.f32 %v216, %v252
        %v261 = vadd.f32 %v217, %v253
        %v262 = vadd.f32 %v218, %v254
        %v263 = vadd.f32 %v219, %v255
        %v264 = vadd.f32 %v220, %v256
        %v265 = vadd.f32 %v221, %v257
        %v266 = vadd.f32 %v222, %v258
        %vm267 = vcmp.eq.s32.totalorder %v174, 2
        %v268 = vsel %vm267, 1, 0
        %v269 = vlaneseq
        %v270 = vshrl.u32 %v269, 7
        %v271 = vsub.s32 0, %v270
        %v272 = vrot.slane %v268, %v271
        %v273 = vlaneseq
        %v274 = vshrl.u32 %v273, 7
        %v275 = vsub.s32 1, %v274
        %v276 = vrot.slane %v268, %v275
        %vm277 = vcmp.eq.s32.totalorder %v272, 1
        %vm278 = vcmp.eq.s32.totalorder %v276, 1
        %279 = vset.pattern.permute.xlu0 2
        %280 = vperm.xlu0 %279, %v170
        %v281 = vpop.permute.xlu0 %280
        %283 = vset.pattern.permute.xlu0 2
        %284 = vperm.xlu0 %283, %v171
        %v285 = vpop.permute.xlu0 %284
        %287 = vset.pattern.permute.xlu0 2
        %288 = vperm.xlu0 %287, %v172
        %v289 = vpop.permute.xlu0 %288
        %291 = vset.pattern.permute.xlu0 2
        %292 = vperm.xlu0 %291, %v173
        %v293 = vpop.permute.xlu0 %292
        %v295 = vsel %vm277, %v281, 0.0
        %v296 = vsel %vm278, %v281, 0.0
        %v297 = vsel %vm277, %v285, 0.0
        %v298 = vsel %vm278, %v285, 0.0
        %v299 = vsel %vm277, %v289, 0.0
        %v300 = vsel %vm278, %v289, 0.0
        %v301 = vsel %vm277, %v293, 0.0
        %v302 = vsel %vm278, %v293, 0.0
        %v303 = vadd.f32 %v259, %v295
        %v304 = vadd.f32 %v260, %v296
        %v305 = vadd.f32 %v261, %v297
        %v306 = vadd.f32 %v262, %v298
        %v307 = vadd.f32 %v263, %v299
        %v308 = vadd.f32 %v264, %v300
        %v309 = vadd.f32 %v265, %v301
        %v310 = vadd.f32 %v266, %v302
        %vm311 = vcmp.eq.s32.totalorder %v174, 3
        %v312 = vsel %vm311, 1, 0
        %v313 = vlaneseq
        %v314 = vshrl.u32 %v313, 7
        %v315 = vsub.s32 0, %v314
        %v316 = vrot.slane %v312, %v315
        %v317 = vlaneseq
        %v318 = vshrl.u32 %v317, 7
        %v319 = vsub.s32 1, %v318
        %v320 = vrot.slane %v312, %v319
        %vm321 = vcmp.eq.s32.totalorder %v316, 1
        %vm322 = vcmp.eq.s32.totalorder %v320, 1
        %323 = vset.pattern.permute.xlu0 3
        %324 = vperm.xlu0 %323, %v170
        %v325 = vpop.permute.xlu0 %324
        %327 = vset.pattern.permute.xlu0 3
        %328 = vperm.xlu0 %327, %v171
        %v329 = vpop.permute.xlu0 %328
        %331 = vset.pattern.permute.xlu0 3
        %332 = vperm.xlu0 %331, %v172
        %v333 = vpop.permute.xlu0 %332
        %335 = vset.pattern.permute.xlu0 3
        %336 = vperm.xlu0 %335, %v173
        %v337 = vpop.permute.xlu0 %336
        %v339 = vsel %vm321, %v325, 0.0
        %v340 = vsel %vm322, %v325, 0.0
        %v341 = vsel %vm321, %v329, 0.0
        %v342 = vsel %vm322, %v329, 0.0
        %v343 = vsel %vm321, %v333, 0.0
        %v344 = vsel %vm322, %v333, 0.0
        %v345 = vsel %vm321, %v337, 0.0
        %v346 = vsel %vm322, %v337, 0.0
        %v347 = vadd.f32 %v303, %v339
        %v348 = vadd.f32 %v304, %v340
        %v349 = vadd.f32 %v305, %v341
        %v350 = vadd.f32 %v306, %v342
        %v351 = vadd.f32 %v307, %v343
        %v352 = vadd.f32 %v308, %v344
        %v353 = vadd.f32 %v309, %v345
        %v354 = vadd.f32 %v310, %v346
        %vm355 = vcmp.eq.s32.totalorder %v174, 4
        %v356 = vsel %vm355, 1, 0
        %v357 = vlaneseq
        %v358 = vshrl.u32 %v357, 7
        %v359 = vsub.s32 0, %v358
        %v360 = vrot.slane %v356, %v359
        %v361 = vlaneseq
        %v362 = vshrl.u32 %v361, 7
        %v363 = vsub.s32 1, %v362
        %v364 = vrot.slane %v356, %v363
        %vm365 = vcmp.eq.s32.totalorder %v360, 1
        %vm366 = vcmp.eq.s32.totalorder %v364, 1
        %367 = vset.pattern.permute.xlu0 4
        %368 = vperm.xlu0 %367, %v170
        %v369 = vpop.permute.xlu0 %368
        %371 = vset.pattern.permute.xlu0 4
        %372 = vperm.xlu0 %371, %v171
        %v373 = vpop.permute.xlu0 %372
        %375 = vset.pattern.permute.xlu0 4
        %376 = vperm.xlu0 %375, %v172
        %v377 = vpop.permute.xlu0 %376
        %379 = vset.pattern.permute.xlu0 4
        %380 = vperm.xlu0 %379, %v173
        %v381 = vpop.permute.xlu0 %380
        %v383 = vsel %vm365, %v369, 0.0
        %v384 = vsel %vm366, %v369, 0.0
        %v385 = vsel %vm365, %v373, 0.0
        %v386 = vsel %vm366, %v373, 0.0
        %v387 = vsel %vm365, %v377, 0.0
        %v388 = vsel %vm366, %v377, 0.0
        %v389 = vsel %vm365, %v381, 0.0
        %v390 = vsel %vm366, %v381, 0.0
        %v391 = vadd.f32 %v347, %v383
        %v392 = vadd.f32 %v348, %v384
        %v393 = vadd.f32 %v349, %v385
        %v394 = vadd.f32 %v350, %v386
        %v395 = vadd.f32 %v351, %v387
        %v396 = vadd.f32 %v352, %v388
        %v397 = vadd.f32 %v353, %v389
        %v398 = vadd.f32 %v354, %v390
        %vm399 = vcmp.eq.s32.totalorder %v174, 5
        %v400 = vsel %vm399, 1, 0
        %v401 = vlaneseq
        %v402 = vshrl.u32 %v401, 7
        %v403 = vsub.s32 0, %v402
        %v404 = vrot.slane %v400, %v403
        %v405 = vlaneseq
        %v406 = vshrl.u32 %v405, 7
        %v407 = vsub.s32 1, %v406
        %v408 = vrot.slane %v400, %v407
        %vm409 = vcmp.eq.s32.totalorder %v404, 1
        %vm410 = vcmp.eq.s32.totalorder %v408, 1
        %411 = vset.pattern.permute.xlu0 5
        %412 = vperm.xlu0 %411, %v170
        %v413 = vpop.permute.xlu0 %412
        %415 = vset.pattern.permute.xlu0 5
        %416 = vperm.xlu0 %415, %v171
        %v417 = vpop.permute.xlu0 %416
        %419 = vset.pattern.permute.xlu0 5
        %420 = vperm.xlu0 %419, %v172
        %v421 = vpop.permute.xlu0 %420
        %423 = vset.pattern.permute.xlu0 5
        %424 = vperm.xlu0 %423, %v173
        %v425 = vpop.permute.xlu0 %424
        %v427 = vsel %vm409, %v413, 0.0
        %v428 = vsel %vm410, %v413, 0.0
        %v429 = vsel %vm409, %v417, 0.0
        %v430 = vsel %vm410, %v417, 0.0
        %v431 = vsel %vm409, %v421, 0.0
        %v432 = vsel %vm410, %v421, 0.0
        %v433 = vsel %vm409, %v425, 0.0
        %v434 = vsel %vm410, %v425, 0.0
        %v435 = vadd.f32 %v391, %v427
        %v436 = vadd.f32 %v392, %v428
        %v437 = vadd.f32 %v393, %v429
        %v438 = vadd.f32 %v394, %v430
        %v439 = vadd.f32 %v395, %v431
        %v440 = vadd.f32 %v396, %v432
        %v441 = vadd.f32 %v397, %v433
        %v442 = vadd.f32 %v398, %v434
        %vm443 = vcmp.eq.s32.totalorder %v174, 6
        %v444 = vsel %vm443, 1, 0
        %v445 = vlaneseq
        %v446 = vshrl.u32 %v445, 7
        %v447 = vsub.s32 0, %v446
        %v448 = vrot.slane %v444, %v447
        %v449 = vlaneseq
        %v450 = vshrl.u32 %v449, 7
        %v451 = vsub.s32 1, %v450
        %v452 = vrot.slane %v444, %v451
        %vm453 = vcmp.eq.s32.totalorder %v448, 1
        %vm454 = vcmp.eq.s32.totalorder %v452, 1
        %455 = vset.pattern.permute.xlu0 6
        %456 = vperm.xlu0 %455, %v170
        %v457 = vpop.permute.xlu0 %456
        %459 = vset.pattern.permute.xlu0 6
        %460 = vperm.xlu0 %459, %v171
        %v461 = vpop.permute.xlu0 %460
        %463 = vset.pattern.permute.xlu0 6
        %464 = vperm.xlu0 %463, %v172
        %v465 = vpop.permute.xlu0 %464
        %467 = vset.pattern.permute.xlu0 6
        %468 = vperm.xlu0 %467, %v173
        %v469 = vpop.permute.xlu0 %468
        %v471 = vsel %vm453, %v457, 0.0
        %v472 = vsel %vm454, %v457, 0.0
        %v473 = vsel %vm453, %v461, 0.0
        %v474 = vsel %vm454, %v461, 0.0
        %v475 = vsel %vm453, %v465, 0.0
        %v476 = vsel %vm454, %v465, 0.0
        %v477 = vsel %vm453, %v469, 0.0
        %v478 = vsel %vm454, %v469, 0.0
        %v479 = vadd.f32 %v435, %v471
        %v480 = vadd.f32 %v436, %v472
        %v481 = vadd.f32 %v437, %v473
        %v482 = vadd.f32 %v438, %v474
        %v483 = vadd.f32 %v439, %v475
        %v484 = vadd.f32 %v440, %v476
        %v485 = vadd.f32 %v441, %v477
        %v486 = vadd.f32 %v442, %v478
        %vm487 = vcmp.eq.s32.totalorder %v174, 7
        %v488 = vsel %vm487, 1, 0
        %v489 = vlaneseq
        %v490 = vshrl.u32 %v489, 7
        %v491 = vsub.s32 0, %v490
        %v492 = vrot.slane %v488, %v491
        %v493 = vlaneseq
        %v494 = vshrl.u32 %v493, 7
        %v495 = vsub.s32 1, %v494
        %v496 = vrot.slane %v488, %v495
        %vm497 = vcmp.eq.s32.totalorder %v492, 1
        %vm498 = vcmp.eq.s32.totalorder %v496, 1
        %499 = vset.pattern.permute.xlu0 7
        %500 = vperm.xlu0 %499, %v170
        %v501 = vpop.permute.xlu0 %500
        %503 = vset.pattern.permute.xlu0 7
        %504 = vperm.xlu0 %503, %v171
        %v505 = vpop.permute.xlu0 %504
        %507 = vset.pattern.permute.xlu0 7
        %508 = vperm.xlu0 %507, %v172
        %v509 = vpop.permute.xlu0 %508
        %511 = vset.pattern.permute.xlu0 7
        %512 = vperm.xlu0 %511, %v173
        %v513 = vpop.permute.xlu0 %512
        %v515 = vsel %vm497, %v501, 0.0
        %v516 = vsel %vm498, %v501, 0.0
        %v517 = vsel %vm497, %v505, 0.0
        %v518 = vsel %vm498, %v505, 0.0
        %v519 = vsel %vm497, %v509, 0.0
        %v520 = vsel %vm498, %v509, 0.0
        %v521 = vsel %vm497, %v513, 0.0
        %v522 = vsel %vm498, %v513, 0.0
        %v523 = vadd.f32 %v479, %v515
        %v524 = vadd.f32 %v480, %v516
        %v525 = vadd.f32 %v481, %v517
        %v526 = vadd.f32 %v482, %v518
        %v527 = vadd.f32 %v483, %v519
        %v528 = vadd.f32 %v484, %v520
        %v529 = vadd.f32 %v485, %v521
        %v530 = vadd.f32 %v486, %v522
        %531 = vst [vmem:[%s159] sm:$0xff] %v523
        %532 = vst [vmem:[%s159 + $0x8] sm:$0xff] %v524
        %533 = vst [vmem:[%s159 + $0x10] sm:$0xff] %v525
        %534 = vst [vmem:[%s159 + $0x18] sm:$0xff] %v526
        %535 = vst [vmem:[%s159 + $0x20] sm:$0xff] %v527
        %536 = vst [vmem:[%s159 + $0x28] sm:$0xff] %v528
        %537 = vst [vmem:[%s159 + $0x30] sm:$0xff] %v529
        %538 = vst [vmem:[%s159 + $0x38] sm:$0xff] %v530
        %s539 = sand.u32 %s87, 1
        %s540 = scalar_lea.sflag [#allocation3], %s539
        %s541 = sand.u32 %s87, 1
        %s542 = smul.addr %s541, 64
        %s543 = scalar_lea.vmem [#allocation2], %s542
        // Predicated region
        $region29: #{tpu_custom_call.1} parent=27 // pred_check
          %p544 = pneg %p97
        $region30: #{tpu_custom_call.1} parent=27 // pred_check_branch
          %546 = sbr.rel (%p544) target = $region32
        $region31: #{tpu_custom_call.1} parent=27 // pred_region
          %s547 = smul.u32 2, %s21
          %s549 = ssub.s32 1024, 1024
          %550 = vsyncadd %s540, %s549
          %s551 = smul.addr %s20, 8
          %s552 = sadd.s32 %s547, %s551
          %s553 = smul.addr %s552, 128
          %s554 = scalar_lea.hbm %s2, %s553
          %s555 = sshll.u32 %s543, 4
          %s556 = int_to_ptr.vmem [resolvable:$true] %s555
          %561 = dma.vmem_to_hbm [thread:$0]  %s556, 1024, %s554, %s540, 256, 256, 16
        $region32: #{tpu_custom_call.1} parent=27 // pred_fallthru
          _
      $region28: #{tpu_custom_call.1} parent=5 // pred_fallthru
        _
      %p562 = scmp.le.s32.totalorder 2, %s11
      // Predicated region
      $region33: #{tpu_custom_call.1} parent=5 // pred_check
        %p563 = pneg %p562
      $region34: #{tpu_custom_call.1} parent=5 // pred_check_branch
        %565 = sbr.rel (%p563) target = $region36
      $region35: #{tpu_custom_call.1} parent=5 // pred_region
        %s566 = ssub.s32 %s11, 2
        // Predicated region
        $region37: #{tpu_custom_call.1} parent=35 // pred_check
          %p567 = pneg %p103
        $region38: #{tpu_custom_call.1} parent=35 // pred_check_branch
          %569 = sbr.rel (%p567) target = $region40
        $region39: #{tpu_custom_call.1} parent=35 // pred_region
          %s570 = sand.u32 %s88, 1
          %s571 = scalar_lea.sflag [#allocation3], %s570
          %s572 = sand.u32 %s88, 1
          %s573 = smul.addr %s572, 64
          %s574 = scalar_lea.vmem [#allocation2], %s573
          %575 = dma.done %s571, 1024
        $region40: #{tpu_custom_call.1} parent=35 // pred_fallthru
          _
      $region36: #{tpu_custom_call.1} parent=5 // pred_fallthru
        _
    $region6: #{tpu_custom_call.1} parent=1 // loop_footer
      %s15 = sadd.s32 1, %s11
    $region7: #{tpu_custom_call.1} parent=1 // loop_footer_branch
      %10 = sbr.rel target = $region3
    $region8: #{tpu_custom_call.1} parent=1 // loop_exit
      _
    %576 = vsyncpa [#allocation3], 1
    %s577 = scalar_lea.sflag [#allocation3], 1
    %578 = vsyncpa %s577, 1

</llo_original>
